<compile_context>
chip_gen: v5e
topology: v5e:2x2
jax: 0.10.0
libtpu: 0.0.40
codegen_flags: <defaults>
</compile_context>

<pallas_src>
import logging
from typing import Dict, Optional, Sequence

import jax
import jax.numpy as jnp
from jax import lax
from jax.experimental import pallas as pl
from jax.experimental.pallas import tpu as pltpu


def _round_up(x: int, m: int) -> int:
    return ((x + m - 1) // m) * m


_STATIC_UNROLL_MAX = 32   # static Python unroll below this, fori_loop above
_DMA_SEM_POOL = 16        # shared DMA-semaphore pool size for the HBM path


# -----------------------------------------------------------------------------
# Kernel A: embedding table resident in VMEM (small tables).
# ids live in SMEM (scalar prefetch); each row is one dynamic-index VMEM load
# plus one lane-dense (1, D) store into the output block.  No DMAs, no MXU.
# -----------------------------------------------------------------------------
def _vmem_gather_kernel(ids_ref, tbl_ref, out_ref):
    blk = pl.program_id(0)
    tn = out_ref.shape[0]
    base = blk * tn

    if tn <= _STATIC_UNROLL_MAX:
        for j in range(tn):                                  # static store idx
            row = ids_ref[base + j]                          # SMEM scalar read
            out_ref[pl.ds(j, 1), :] = tbl_ref[pl.ds(row, 1), :]
    else:
        def body(j, carry):
            row = ids_ref[base + j]
            out_ref[pl.ds(j, 1), :] = tbl_ref[pl.ds(row, 1), :]
            return carry
        lax.fori_loop(0, tn, body, 0, unroll=8)


# -----------------------------------------------------------------------------
# Kernel B: embedding table left in HBM (large tables).
# Row DMAs go straight into the output block (no staging buffer) and share a
# small semaphore pool.  All scalar id reads happen before any wait.
# -----------------------------------------------------------------------------
def _hbm_gather_kernel(ids_ref, emb_hbm, out_ref, sems):
    blk = pl.program_id(0)
    tn = out_ref.shape[0]
    base = blk * tn
    pool = sems.shape[0]

    if tn <= _STATIC_UNROLL_MAX:
        copies = []
        for j in range(tn):
            row = ids_ref[base + j]
            cp = pltpu.make_async_copy(
                emb_hbm.at[pl.ds(row, 1), :],
                out_ref.at[pl.ds(j, 1), :],
                sems.at[j % pool],
            )
            cp.start()
            copies.append(cp)
        for cp in copies:
            cp.wait()
    else:
        def issue(j, carry):
            row = ids_ref[base + j]
            pltpu.make_async_copy(
                emb_hbm.at[pl.ds(row, 1), :],
                out_ref.at[pl.ds(j, 1), :],
                sems.at[j % pool],
            ).start()
            return carry
        lax.fori_loop(0, tn, issue, 0, unroll=8)

        # Every transfer is an identical (1, D) row, so one wait per issued
        # copy on its pool slot retires them (the descriptor only supplies the
        # byte count and the semaphore).
        def drain(j, carry):
            pltpu.make_async_copy(
                emb_hbm.at[pl.ds(0, 1), :],
                out_ref.at[pl.ds(0, 1), :],
                sems.at[j % pool],
            ).wait()
            return carry
        lax.fori_loop(0, tn, drain, 0, unroll=8)


# -----------------------------------------------------------------------------
# Wrapper: synthetic stand-in for hf_model(input_ids).last_hidden_state
# -----------------------------------------------------------------------------
def encode_with_pallas(input_ids: jax.Array, emb_table: jax.Array, *,
                       token_block: Optional[int] = None,
                       vmem_table_budget_bytes: int = 4 * 1024 * 1024) -> jax.Array:
    """Gather N = B*L rows of the (V, D) embedding table via Pallas."""
    B, L = input_ids.shape
    V, D = emb_table.shape
    N = B * L
    itemsize = jnp.dtype(emb_table.dtype).itemsize
    table_bytes = V * D * itemsize

    # Strategy: keep the whole table VMEM-resident when it is small (per-row
    # HBM DMAs of D*itemsize bytes are descriptor-bound, not bandwidth-bound);
    # otherwise leave it in HBM and row-DMA directly into the output block.
    use_vmem_table = table_bytes <= vmem_table_budget_bytes

    # Sublane packing granularity of the table dtype (8 f32, 16 bf16, 32 i8).
    pack = {4: 8, 2: 16, 1: 32}.get(itemsize, 8)

    if token_block is None:
        token_block = 512   # amortize the ~0.35 us/step fixed grid overhead
        # Fit (double-buffered output block + resident table) inside the
        # default ~32 MiB scoped VMEM with headroom (v7x has only 64 MiB).
        while token_block > pack and (
                2 * token_block * D * itemsize
                + (table_bytes if use_vmem_table else 0)) > 24 * 1024 * 1024:
            token_block //= 2
        token_block = min(token_block, _round_up(N, pack))
    token_block = max(pack, _round_up(token_block, pack))

    n_tot = _round_up(N, token_block)

    # Clamp ids (matches emb_table[ids] clamping; avoids OOB gathers).
    ids = jnp.clip(input_ids.reshape(N).astype(jnp.int32), 0, V - 1)
    if n_tot != N:   # pad once so every grid step sees a full block
        ids = jnp.concatenate([ids, jnp.zeros((n_tot - N,), jnp.int32)])

    vmem_needed = (2 * token_block * D * itemsize
                   + (table_bytes if use_vmem_table else 0) + (1 << 20))
    vmem_limit = int(max(32 * 1024 * 1024,
                         min(64 * 1024 * 1024, 2 * vmem_needed)))

    if use_vmem_table:
        kernel = _vmem_gather_kernel
        in_specs = [pl.BlockSpec((V, D), lambda b, ids_sref: (0, 0))]  # resident
        scratch_shapes = []
    else:
        kernel = _hbm_gather_kernel
        in_specs = [pl.BlockSpec(memory_space=pl.ANY)]                 # HBM
        scratch_shapes = [
            pltpu.SemaphoreType.DMA((min(_DMA_SEM_POOL, token_block),))]

    out = pl.pallas_call(
        kernel,
        out_shape=jax.ShapeDtypeStruct((n_tot, D), emb_table.dtype),
        grid_spec=pltpu.PrefetchScalarGridSpec(
            num_scalar_prefetch=1,                       # ids -> SMEM
            grid=(n_tot // token_block,),
            in_specs=in_specs,
            out_specs=pl.BlockSpec((token_block, D), lambda b, ids_sref: (b, 0)),
            scratch_shapes=scratch_shapes,
        ),
        compiler_params=pltpu.CompilerParams(
            dimension_semantics=("parallel",),           # megacore / 2-TC v7x
            vmem_limit_bytes=vmem_limit,
        ),
    )(ids, emb_table)

    if n_tot != N:
        out = out[:N]
    return out.reshape(B, L, D)


# -----------------------------------------------------------------------------
# generate_proper_pad_mask  (plain JAX: stack -> any(last) -> broadcast)
# -----------------------------------------------------------------------------
def generate_proper_pad_mask(tokens: jax.Array,
                             pad_mask_dict: Optional[Dict[str, jax.Array]],
                             keys: Sequence[str]) -> jax.Array:
    if pad_mask_dict is None:
        logging.warning("No pad_mask_dict found. Nothing will be masked.")
        return jnp.ones(tokens.shape[:-1], dtype=jnp.bool_)
    if not all(key in pad_mask_dict for key in keys):
        logging.warning("pad_mask_dict missing keys. Nothing will be masked.")
        return jnp.ones(tokens.shape[:-1], dtype=jnp.bool_)

    pad_mask = jnp.stack([pad_mask_dict[key] for key in keys], axis=-1)
    pad_mask = jnp.any(pad_mask, axis=-1)
    pad_mask = jnp.broadcast_to(pad_mask[..., None], tokens.shape[:-1])
    return pad_mask


# -----------------------------------------------------------------------------
# LanguageTokenizerPt.forward equivalent
# -----------------------------------------------------------------------------
def language_tokenizer_forward(observations: Dict[str, jax.Array],
                               tasks: Optional[Dict[str, object]],
                               *, emb_table: jax.Array,
                               finetune_encoder: bool = False,
                               proper_pad_mask: bool = True,
                               train: bool = True):
    del observations, train
    if tasks is None or "language_instruction" not in tasks:
        logging.warning("No language inputs found. Skipping tokenizer entirely.")
        assert proper_pad_mask, "Cannot skip unless using proper pad mask."
        return None

    li = tasks["language_instruction"]
    if isinstance(li, dict):
        # "HF encoder" path: token ids -> embeddings via Pallas gather.
        # TODO(synk): a full pre-trained T5 encoder stack is not reproduced;
        # a deterministic synthetic embedding encoder stands in for it.
        tokens = encode_with_pallas(li["input_ids"], emb_table)
    elif li.ndim == 2:
        tokens = li[:, None, :]
    else:
        tokens = li

    if not finetune_encoder:
        # .detach() equivalent.
        # TODO(synk): the Pallas gather has no VJP; define a custom_vjp
        # (scatter-add of cotangents) before exposing finetune_encoder=True.
        tokens = jax.lax.stop_gradient(tokens)

    if proper_pad_mask:
        pad_mask = generate_proper_pad_mask(
            tokens, tasks.get("pad_mask_dict", None), ("language_instruction",))
    else:
        pad_mask = jnp.ones(tokens.shape[:-1], dtype=jnp.bool_)

    # TokenGroupPt(tokens, pad_mask) equivalent
    return {"tokens": tokens, "mask": pad_mask}


# -----------------------------------------------------------------------------
if __name__ == "__main__":
    B, L, V, D = 2, 8, 256, 128   # batch, seq, vocab, d_model (small synthetic)

    key = jax.random.PRNGKey(0)
    k_emb, k_ids = jax.random.split(key)

    # Deterministic "encoder" parameters (synthetic embedding table).
    emb_table = jax.random.normal(k_emb, (V, D), dtype=jnp.float32)

    # Example inputs.
    input_ids = jax.random.randint(k_ids, (B, L), 0, V, dtype=jnp.int32)
    attention_mask = jnp.ones((B, L), dtype=jnp.int32)
    pad_mask_dict = {"language_instruction": jnp.array([True, False])}  # (B,)

    observations = {}
    tasks = {
        "language_instruction": {"input_ids": input_ids,
                                 "attention_mask": attention_mask},
        "pad_mask_dict": pad_mask_dict,
    }

    out = language_tokenizer_forward(observations, tasks, emb_table=emb_table)
    tokens = jax.block_until_ready(out["tokens"])
    mask = jax.block_until_ready(out["mask"])

    # Reference check (pure JAX).
    tokens_ref = emb_table[input_ids]                               # (B, L, D)
    mask_ref = jnp.broadcast_to(
        pad_mask_dict["language_instruction"][:, None], (B, L))     # (B, L)

    assert tokens.shape == (B, L, D) and tokens.dtype == jnp.float32
    assert mask.shape == (B, L) and mask.dtype == jnp.bool_
    assert jnp.allclose(tokens, tokens_ref, atol=1e-6), "VMEM-table gather mismatch"
    assert jnp.array_equal(mask, mask_ref), "pad mask mismatch"

    # Also exercise the large-table path (HBM-resident table, row DMAs issued
    # directly into the output block) by forcing the VMEM budget to zero.
    tokens_hbm = jax.block_until_ready(
        encode_with_pallas(input_ids, emb_table, vmem_table_budget_bytes=0))
    assert jnp.allclose(tokens_hbm, tokens_ref, atol=1e-6), "HBM DMA gather mismatch"

    print("KERNEL_OK")
</pallas_src>

<mosaic_0001>
module attributes {stable_mosaic.version = 11 : i64} {
  func.func @_vmem_gather_kernel(%arg0: i32, %arg1: memref<16xi32, #tpu.memory_space<smem>>, %arg2: memref<256x128xf32, #tpu.memory_space<vmem>>, %arg3: memref<16x128xf32, #tpu.memory_space<vmem>>) attributes {dimension_semantics = [#tpu.dimension_semantics<parallel>], iteration_bounds = array<i64: 1>, scalar_prefetch = 1 : i64, scratch_operands = 0 : i64, tpu.core_type = #tpu.core_type<tc>, window_params = [{pipeline_mode = #tpu.pipeline_mode<synchronous>, transform_indices = @transform_0, window_bounds = array<i64: 256, 128>}, {transform_indices = @transform_1, window_bounds = array<i64: 16, 128>}]} {
    %c16_i32 = arith.constant 16 : i32
    %0 = arith.muli %arg0, %c16_i32 : i32
    %c0_i32 = arith.constant 0 : i32
    %1 = arith.addi %0, %c0_i32 : i32
    %2 = arith.index_cast %1 : i32 to index
    %3 = memref.load %arg1[%2] : memref<16xi32, #tpu.memory_space<smem>>
    %4 = arith.index_cast %3 : i32 to index
    %c0 = arith.constant 0 : index
    %5 = vector.load %arg2[%4, %c0] : memref<256x128xf32, #tpu.memory_space<vmem>>, vector<1x128xf32>
    %c0_0 = arith.constant 0 : index
    %c0_1 = arith.constant 0 : index
    %6 = vector.load %arg3[%c0_0, %c0_1] : memref<16x128xf32, #tpu.memory_space<vmem>>, vector<1x128xf32>
    tpu.vector_store %arg3[%c0_0, %c0_1], %5 {strides = array<i32>} : memref<16x128xf32, #tpu.memory_space<vmem>>, vector<1x128xf32>,
    %c1_i32 = arith.constant 1 : i32
    %7 = arith.addi %0, %c1_i32 : i32
    %8 = arith.index_cast %7 : i32 to index
    %9 = memref.load %arg1[%8] : memref<16xi32, #tpu.memory_space<smem>>
    %10 = arith.index_cast %9 : i32 to index
    %c0_2 = arith.constant 0 : index
    %11 = vector.load %arg2[%10, %c0_2] : memref<256x128xf32, #tpu.memory_space<vmem>>, vector<1x128xf32>
    %c1 = arith.constant 1 : index
    %c0_3 = arith.constant 0 : index
    %12 = vector.load %arg3[%c1, %c0_3] : memref<16x128xf32, #tpu.memory_space<vmem>>, vector<1x128xf32>
    tpu.vector_store %arg3[%c1, %c0_3], %11 {strides = array<i32>} : memref<16x128xf32, #tpu.memory_space<vmem>>, vector<1x128xf32>,
    %c2_i32 = arith.constant 2 : i32
    %13 = arith.addi %0, %c2_i32 : i32
    %14 = arith.index_cast %13 : i32 to index
    %15 = memref.load %arg1[%14] : memref<16xi32, #tpu.memory_space<smem>>
    %16 = arith.index_cast %15 : i32 to index
    %c0_4 = arith.constant 0 : index
    %17 = vector.load %arg2[%16, %c0_4] : memref<256x128xf32, #tpu.memory_space<vmem>>, vector<1x128xf32>
    %c2 = arith.constant 2 : index
    %c0_5 = arith.constant 0 : index
    %18 = vector.load %arg3[%c2, %c0_5] : memref<16x128xf32, #tpu.memory_space<vmem>>, vector<1x128xf32>
    tpu.vector_store %arg3[%c2, %c0_5], %17 {strides = array<i32>} : memref<16x128xf32, #tpu.memory_space<vmem>>, vector<1x128xf32>,
    %c3_i32 = arith.constant 3 : i32
    %19 = arith.addi %0, %c3_i32 : i32
    %20 = arith.index_cast %19 : i32 to index
    %21 = memref.load %arg1[%20] : memref<16xi32, #tpu.memory_space<smem>>
    %22 = arith.index_cast %21 : i32 to index
    %c0_6 = arith.constant 0 : index
    %23 = vector.load %arg2[%22, %c0_6] : memref<256x128xf32, #tpu.memory_space<vmem>>, vector<1x128xf32>
    %c3 = arith.constant 3 : index
    %c0_7 = arith.constant 0 : index
    %24 = vector.load %arg3[%c3, %c0_7] : memref<16x128xf32, #tpu.memory_space<vmem>>, vector<1x128xf32>
    tpu.vector_store %arg3[%c3, %c0_7], %23 {strides = array<i32>} : memref<16x128xf32, #tpu.memory_space<vmem>>, vector<1x128xf32>,
    %c4_i32 = arith.constant 4 : i32
    %25 = arith.addi %0, %c4_i32 : i32
    %26 = arith.index_cast %25 : i32 to index
    %27 = memref.load %arg1[%26] : memref<16xi32, #tpu.memory_space<smem>>
    %28 = arith.index_cast %27 : i32 to index
    %c0_8 = arith.constant 0 : index
    %29 = vector.load %arg2[%28, %c0_8] : memref<256x128xf32, #tpu.memory_space<vmem>>, vector<1x128xf32>
    %c4 = arith.constant 4 : index
    %c0_9 = arith.constant 0 : index
    %30 = vector.load %arg3[%c4, %c0_9] : memref<16x128xf32, #tpu.memory_space<vmem>>, vector<1x128xf32>
    tpu.vector_store %arg3[%c4, %c0_9], %29 {strides = array<i32>} : memref<16x128xf32, #tpu.memory_space<vmem>>, vector<1x128xf32>,
    %c5_i32 = arith.constant 5 : i32
    %31 = arith.addi %0, %c5_i32 : i32
    %32 = arith.index_cast %31 : i32 to index
    %33 = memref.load %arg1[%32] : memref<16xi32, #tpu.memory_space<smem>>
    %34 = arith.index_cast %33 : i32 to index
    %c0_10 = arith.constant 0 : index
    %35 = vector.load %arg2[%34, %c0_10] : memref<256x128xf32, #tpu.memory_space<vmem>>, vector<1x128xf32>
    %c5 = arith.constant 5 : index
    %c0_11 = arith.constant 0 : index
    %36 = vector.load %arg3[%c5, %c0_11] : memref<16x128xf32, #tpu.memory_space<vmem>>, vector<1x128xf32>
    tpu.vector_store %arg3[%c5, %c0_11], %35 {strides = array<i32>} : memref<16x128xf32, #tpu.memory_space<vmem>>, vector<1x128xf32>,
    %c6_i32 = arith.constant 6 : i32
    %37 = arith.addi %0, %c6_i32 : i32
    %38 = arith.index_cast %37 : i32 to index
    %39 = memref.load %arg1[%38] : memref<16xi32, #tpu.memory_space<smem>>
    %40 = arith.index_cast %39 : i32 to index
    %c0_12 = arith.constant 0 : index
    %41 = vector.load %arg2[%40, %c0_12] : memref<256x128xf32, #tpu.memory_space<vmem>>, vector<1x128xf32>
    %c6 = arith.constant 6 : index
    %c0_13 = arith.constant 0 : index
    %42 = vector.load %arg3[%c6, %c0_13] : memref<16x128xf32, #tpu.memory_space<vmem>>, vector<1x128xf32>
    tpu.vector_store %arg3[%c6, %c0_13], %41 {strides = array<i32>} : memref<16x128xf32, #tpu.memory_space<vmem>>, vector<1x128xf32>,
    %c7_i32 = arith.constant 7 : i32
    %43 = arith.addi %0, %c7_i32 : i32
    %44 = arith.index_cast %43 : i32 to index
    %45 = memref.load %arg1[%44] : memref<16xi32, #tpu.memory_space<smem>>
    %46 = arith.index_cast %45 : i32 to index
    %c0_14 = arith.constant 0 : index
    %47 = vector.load %arg2[%46, %c0_14] : memref<256x128xf32, #tpu.memory_space<vmem>>, vector<1x128xf32>
    %c7 = arith.constant 7 : index
    %c0_15 = arith.constant 0 : index
    %48 = vector.load %arg3[%c7, %c0_15] : memref<16x128xf32, #tpu.memory_space<vmem>>, vector<1x128xf32>
    tpu.vector_store %arg3[%c7, %c0_15], %47 {strides = array<i32>} : memref<16x128xf32, #tpu.memory_space<vmem>>, vector<1x128xf32>,
    %c8_i32 = arith.constant 8 : i32
    %49 = arith.addi %0, %c8_i32 : i32
    %50 = arith.index_cast %49 : i32 to index
    %51 = memref.load %arg1[%50] : memref<16xi32, #tpu.memory_space<smem>>
    %52 = arith.index_cast %51 : i32 to index
    %c0_16 = arith.constant 0 : index
    %53 = vector.load %arg2[%52, %c0_16] : memref<256x128xf32, #tpu.memory_space<vmem>>, vector<1x128xf32>
    %c8 = arith.constant 8 : index
    %c0_17 = arith.constant 0 : index
    %54 = vector.load %arg3[%c8, %c0_17] : memref<16x128xf32, #tpu.memory_space<vmem>>, vector<1x128xf32>
    tpu.vector_store %arg3[%c8, %c0_17], %53 {strides = array<i32>} : memref<16x128xf32, #tpu.memory_space<vmem>>, vector<1x128xf32>,
    %c9_i32 = arith.constant 9 : i32
    %55 = arith.addi %0, %c9_i32 : i32
    %56 = arith.index_cast %55 : i32 to index
    %57 = memref.load %arg1[%56] : memref<16xi32, #tpu.memory_space<smem>>
    %58 = arith.index_cast %57 : i32 to index
    %c0_18 = arith.constant 0 : index
    %59 = vector.load %arg2[%58, %c0_18] : memref<256x128xf32, #tpu.memory_space<vmem>>, vector<1x128xf32>
    %c9 = arith.constant 9 : index
    %c0_19 = arith.constant 0 : index
    %60 = vector.load %arg3[%c9, %c0_19] : memref<16x128xf32, #tpu.memory_space<vmem>>, vector<1x128xf32>
    tpu.vector_store %arg3[%c9, %c0_19], %59 {strides = array<i32>} : memref<16x128xf32, #tpu.memory_space<vmem>>, vector<1x128xf32>,
    %c10_i32 = arith.constant 10 : i32
    %61 = arith.addi %0, %c10_i32 : i32
    %62 = arith.index_cast %61 : i32 to index
    %63 = memref.load %arg1[%62] : memref<16xi32, #tpu.memory_space<smem>>
    %64 = arith.index_cast %63 : i32 to index
    %c0_20 = arith.constant 0 : index
    %65 = vector.load %arg2[%64, %c0_20] : memref<256x128xf32, #tpu.memory_space<vmem>>, vector<1x128xf32>
    %c10 = arith.constant 10 : index
    %c0_21 = arith.constant 0 : index
    %66 = vector.load %arg3[%c10, %c0_21] : memref<16x128xf32, #tpu.memory_space<vmem>>, vector<1x128xf32>
    tpu.vector_store %arg3[%c10, %c0_21], %65 {strides = array<i32>} : memref<16x128xf32, #tpu.memory_space<vmem>>, vector<1x128xf32>,
    %c11_i32 = arith.constant 11 : i32
    %67 = arith.addi %0, %c11_i32 : i32
    %68 = arith.index_cast %67 : i32 to index
    %69 = memref.load %arg1[%68] : memref<16xi32, #tpu.memory_space<smem>>
    %70 = arith.index_cast %69 : i32 to index
    %c0_22 = arith.constant 0 : index
    %71 = vector.load %arg2[%70, %c0_22] : memref<256x128xf32, #tpu.memory_space<vmem>>, vector<1x128xf32>
    %c11 = arith.constant 11 : index
    %c0_23 = arith.constant 0 : index
    %72 = vector.load %arg3[%c11, %c0_23] : memref<16x128xf32, #tpu.memory_space<vmem>>, vector<1x128xf32>
    tpu.vector_store %arg3[%c11, %c0_23], %71 {strides = array<i32>} : memref<16x128xf32, #tpu.memory_space<vmem>>, vector<1x128xf32>,
    %c12_i32 = arith.constant 12 : i32
    %73 = arith.addi %0, %c12_i32 : i32
    %74 = arith.index_cast %73 : i32 to index
    %75 = memref.load %arg1[%74] : memref<16xi32, #tpu.memory_space<smem>>
    %76 = arith.index_cast %75 : i32 to index
    %c0_24 = arith.constant 0 : index
    %77 = vector.load %arg2[%76, %c0_24] : memref<256x128xf32, #tpu.memory_space<vmem>>, vector<1x128xf32>
    %c12 = arith.constant 12 : index
    %c0_25 = arith.constant 0 : index
    %78 = vector.load %arg3[%c12, %c0_25] : memref<16x128xf32, #tpu.memory_space<vmem>>, vector<1x128xf32>
    tpu.vector_store %arg3[%c12, %c0_25], %77 {strides = array<i32>} : memref<16x128xf32, #tpu.memory_space<vmem>>, vector<1x128xf32>,
    %c13_i32 = arith.constant 13 : i32
    %79 = arith.addi %0, %c13_i32 : i32
    %80 = arith.index_cast %79 : i32 to index
    %81 = memref.load %arg1[%80] : memref<16xi32, #tpu.memory_space<smem>>
    %82 = arith.index_cast %81 : i32 to index
    %c0_26 = arith.constant 0 : index
    %83 = vector.load %arg2[%82, %c0_26] : memref<256x128xf32, #tpu.memory_space<vmem>>, vector<1x128xf32>
    %c13 = arith.constant 13 : index
    %c0_27 = arith.constant 0 : index
    %84 = vector.load %arg3[%c13, %c0_27] : memref<16x128xf32, #tpu.memory_space<vmem>>, vector<1x128xf32>
    tpu.vector_store %arg3[%c13, %c0_27], %83 {strides = array<i32>} : memref<16x128xf32, #tpu.memory_space<vmem>>, vector<1x128xf32>,
    %c14_i32 = arith.constant 14 : i32
    %85 = arith.addi %0, %c14_i32 : i32
    %86 = arith.index_cast %85 : i32 to index
    %87 = memref.load %arg1[%86] : memref<16xi32, #tpu.memory_space<smem>>
    %88 = arith.index_cast %87 : i32 to index
    %c0_28 = arith.constant 0 : index
    %89 = vector.load %arg2[%88, %c0_28] : memref<256x128xf32, #tpu.memory_space<vmem>>, vector<1x128xf32>
    %c14 = arith.constant 14 : index
    %c0_29 = arith.constant 0 : index
    %90 = vector.load %arg3[%c14, %c0_29] : memref<16x128xf32, #tpu.memory_space<vmem>>, vector<1x128xf32>
    tpu.vector_store %arg3[%c14, %c0_29], %89 {strides = array<i32>} : memref<16x128xf32, #tpu.memory_space<vmem>>, vector<1x128xf32>,
    %c15_i32 = arith.constant 15 : i32
    %91 = arith.addi %0, %c15_i32 : i32
    %92 = arith.index_cast %91 : i32 to index
    %93 = memref.load %arg1[%92] : memref<16xi32, #tpu.memory_space<smem>>
    %94 = arith.index_cast %93 : i32 to index
    %c0_30 = arith.constant 0 : index
    %95 = vector.load %arg2[%94, %c0_30] : memref<256x128xf32, #tpu.memory_space<vmem>>, vector<1x128xf32>
    %c15 = arith.constant 15 : index
    %c0_31 = arith.constant 0 : index
    %96 = vector.load %arg3[%c15, %c0_31] : memref<16x128xf32, #tpu.memory_space<vmem>>, vector<1x128xf32>
    tpu.vector_store %arg3[%c15, %c0_31], %95 {strides = array<i32>} : memref<16x128xf32, #tpu.memory_space<vmem>>, vector<1x128xf32>,
    return
  }
  func.func @transform_0(%arg0: i32, %arg1: memref<16xi32, #tpu.memory_space<smem>>) -> (i32, i32) {
    %c0_i32 = arith.constant 0 : i32
    %c0_i32_0 = arith.constant 0 : i32
    %c0_i32_1 = arith.constant 0 : i32
    return %c0_i32, %c0_i32_0 : i32, i32
  }
  func.func @transform_1(%arg0: i32, %arg1: memref<16xi32, #tpu.memory_space<smem>>) -> (i32, i32) {
    %c0_i32 = arith.constant 0 : i32
    %c0_i32_0 = arith.constant 0 : i32
    return %arg0, %c0_i32 : i32, i32
  }
}

</mosaic_0001>

<llo_original>
// kernel: tpu_custom_call.1
$region0: #{tpu_custom_call.1}
  #allocation0 [shape = 'u32[]', space=smem, size = 0x4, offset = 0x4, fixed_abs, tag = 'smem constant byte address 0x4 - core index']
  #allocation1 [shape = 'u32[72,128]{1,0:T(1,128)}', space=vmem, size = 0x9000, scoped, tag = 'internal scratch']
  #allocation2 [shape = 's32[1]{0}', space=sflag, size = 0x4, scoped, tag = 'scoped memory for tpu_custom_call.1']
  #allocation3 [shape = 'u8[512]{0}', space=smem, size = 0x200, scoped, tag = 'prefetched SMEM operand 0']
  %s0 = inlined_call_operand.hbm [shape: s32[16], index: 0, kind: input, shape index: {}]
  %s1 = inlined_call_operand.hbm [shape: f32[256,128], index: 1, kind: input, shape index: {}]
  %s2 = inlined_call_operand.hbm [shape: f32[16,128], index: 2, kind: output, shape index: {}]
  %s3 = sld [smem:[#allocation0]]
  $region18: #{tpu_custom_call.1} parent=0
    _
  %s5 = ssub.s32 1, %s3
  %s6 = scalar_select 0, %s5, %s3
  %s8 = sshll.u32 %s0, 4
  %s9 = int_to_ptr.hbm [resolvable:$true] %s8
  %11 = dma.hbm_to_smem %s9, 16, [#allocation3], [#allocation2]
  %13 = dma.done [#allocation2], 16
  %14 = sfence
  $region1: #{tpu_custom_call.1} parent=0
    #allocation4 [shape = 'u8[131072]{0}', space=vmem, size = 0x20000, scoped, tag = 'input window, operand 1, single buffered']
    #allocation5 [shape = 's32[1]{0}', space=sflag, size = 0x4, scoped, tag = 'scoped memory for tpu_custom_call.1']
    #allocation6 [shape = 's32[1]{0}', space=sflag, size = 0x4, scoped, tag = 'scoped memory for tpu_custom_call.1']
    #allocation7 [shape = 'u8[8192]{0}', space=vmem, size = 0x2000, scoped, tag = 'output window, operand 0, single buffered']
    %15 = vsyncpa [#allocation5], 0
    %16 = vsyncpa [#allocation6], 0
    // Predicated region
    $region2: #{tpu_custom_call.1} parent=1 // pred_check
      _
    $region3: #{tpu_custom_call.1} parent=1 // pred_check_branch
      %18 = sbr.rel (0) target = $region5
    $region4: #{tpu_custom_call.1} parent=1 // pred_region
      %20 = vsyncadd [#allocation5], 0
      %s21 = sshll.u32 %s1, 4
      %s22 = int_to_ptr.hbm [resolvable:$true] %s21
      %s23 = sshll.u32 [#allocation4], 4
      %s24 = int_to_ptr.vmem [resolvable:$true] %s23
      %29 = dma.hbm_to_vmem [thread:$0]  %s22, 4096, %s24, [#allocation5], 128, 128, 8
    $region5: #{tpu_custom_call.1} parent=1 // pred_fallthru
      _
    // Predicated region
    $region6: #{tpu_custom_call.1} parent=1 // pred_check
      _
    $region7: #{tpu_custom_call.1} parent=1 // pred_check_branch
      %31 = sbr.rel (0) target = $region9
    $region8: #{tpu_custom_call.1} parent=1 // pred_region
      %33 = dma.done [#allocation5], 4096
    $region9: #{tpu_custom_call.1} parent=1 // pred_fallthru
      _
    %s34 = smul.u32 0, 16
    %s35 = sld [smem:[#allocation3 + %s34]]
    %s36 = scalar_lea.vmem [#allocation4], %s35
    %v37 = vld [vmem:[%s36] sm:$0x1]
    %38 = vst [vmem:[#allocation7] sm:$0x1] %v37
    %s39 = sadd.s32 %s34, 1
    %s40 = sld [smem:[#allocation3 + %s39]]
    %s41 = scalar_lea.vmem [#allocation4], %s40
    %v42 = vld [vmem:[%s41] sm:$0x1]
    %43 = vst [vmem:[#allocation7 + $0x1] sm:$0x1] %v42
    %s44 = sadd.s32 %s34, 2
    %s45 = sld [smem:[#allocation3 + %s44]]
    %s46 = scalar_lea.vmem [#allocation4], %s45
    %v47 = vld [vmem:[%s46] sm:$0x1]
    %48 = vst [vmem:[#allocation7 + $0x2] sm:$0x1] %v47
    %s49 = sadd.s32 %s34, 3
    %s50 = sld [smem:[#allocation3 + %s49]]
    %s51 = scalar_lea.vmem [#allocation4], %s50
    %v52 = vld [vmem:[%s51] sm:$0x1]
    %53 = vst [vmem:[#allocation7 + $0x3] sm:$0x1] %v52
    %s54 = sadd.s32 %s34, 4
    %s55 = sld [smem:[#allocation3 + %s54]]
    %s56 = scalar_lea.vmem [#allocation4], %s55
    %v57 = vld [vmem:[%s56] sm:$0x1]
    %58 = vst [vmem:[#allocation7 + $0x4] sm:$0x1] %v57
    %s59 = sadd.s32 %s34, 5
    %s60 = sld [smem:[#allocation3 + %s59]]
    %s61 = scalar_lea.vmem [#allocation4], %s60
    %v62 = vld [vmem:[%s61] sm:$0x1]
    %63 = vst [vmem:[#allocation7 + $0x5] sm:$0x1] %v62
    %s64 = sadd.s32 %s34, 6
    %s65 = sld [smem:[#allocation3 + %s64]]
    %s66 = scalar_lea.vmem [#allocation4], %s65
    %v67 = vld [vmem:[%s66] sm:$0x1]
    %68 = vst [vmem:[#allocation7 + $0x6] sm:$0x1] %v67
    %s69 = sadd.s32 %s34, 7
    %s70 = sld [smem:[#allocation3 + %s69]]
    %s71 = scalar_lea.vmem [#allocation4], %s70
    %v72 = vld [vmem:[%s71] sm:$0x1]
    %73 = vst [vmem:[#allocation7 + $0x7] sm:$0x1] %v72
    %s74 = sadd.s32 %s34, 8
    %s75 = sld [smem:[#allocation3 + %s74]]
    %s76 = scalar_lea.vmem [#allocation4], %s75
    %v77 = vld [vmem:[%s76] sm:$0x1]
    %78 = vst [vmem:[#allocation7 + $0x8] sm:$0x1] %v77
    %s79 = sadd.s32 %s34, 9
    %s80 = sld [smem:[#allocation3 + %s79]]
    %s81 = scalar_lea.vmem [#allocation4], %s80
    %v82 = vld [vmem:[%s81] sm:$0x1]
    %83 = vst [vmem:[#allocation7 + $0x9] sm:$0x1] %v82
    %s84 = sadd.s32 %s34, 10
    %s85 = sld [smem:[#allocation3 + %s84]]
    %s86 = scalar_lea.vmem [#allocation4], %s85
    %v87 = vld [vmem:[%s86] sm:$0x1]
    %88 = vst [vmem:[#allocation7 + $0xa] sm:$0x1] %v87
    %s89 = sadd.s32 %s34, 11
    %s90 = sld [smem:[#allocation3 + %s89]]
    %s91 = scalar_lea.vmem [#allocation4], %s90
    %v92 = vld [vmem:[%s91] sm:$0x1]
    %93 = vst [vmem:[#allocation7 + $0xb] sm:$0x1] %v92
    %s94 = sadd.s32 %s34, 12
    %s95 = sld [smem:[#allocation3 + %s94]]
    %s96 = scalar_lea.vmem [#allocation4], %s95
    %v97 = vld [vmem:[%s96] sm:$0x1]
    %98 = vst [vmem:[#allocation7 + $0xc] sm:$0x1] %v97
    %s99 = sadd.s32 %s34, 13
    %s100 = sld [smem:[#allocation3 + %s99]]
    %s101 = scalar_lea.vmem [#allocation4], %s100
    %v102 = vld [vmem:[%s101] sm:$0x1]
    %103 = vst [vmem:[#allocation7 + $0xd] sm:$0x1] %v102
    %s104 = sadd.s32 %s34, 14
    %s105 = sld [smem:[#allocation3 + %s104]]
    %s106 = scalar_lea.vmem [#allocation4], %s105
    %v107 = vld [vmem:[%s106] sm:$0x1]
    %108 = vst [vmem:[#allocation7 + $0xe] sm:$0x1] %v107
    %s109 = sadd.s32 %s34, 15
    %s110 = sld [smem:[#allocation3 + %s109]]
    %s111 = scalar_lea.vmem [#allocation4], %s110
    %v112 = vld [vmem:[%s111] sm:$0x1]
    %113 = vst [vmem:[#allocation7 + $0xf] sm:$0x1] %v112
    // Predicated region
    $region10: #{tpu_custom_call.1} parent=1 // pred_check
      _
    $region11: #{tpu_custom_call.1} parent=1 // pred_check_branch
      %115 = sbr.rel (0) target = $region13
    $region12: #{tpu_custom_call.1} parent=1 // pred_region
      %117 = vsyncadd [#allocation6], 0
      %s118 = sshll.u32 [#allocation7], 4
      %s119 = int_to_ptr.vmem [resolvable:$true] %s118
      %s120 = sshll.u32 %s2, 4
      %s121 = int_to_ptr.hbm [resolvable:$true] %s120
      %126 = dma.vmem_to_hbm [thread:$0]  %s119, 256, %s121, [#allocation6], 128, 128, 8
    $region13: #{tpu_custom_call.1} parent=1 // pred_fallthru
      _
    // Predicated region
    $region14: #{tpu_custom_call.1} parent=1 // pred_check
      _
    $region15: #{tpu_custom_call.1} parent=1 // pred_check_branch
      %128 = sbr.rel (0) target = $region17
    $region16: #{tpu_custom_call.1} parent=1 // pred_region
      %130 = dma.done [#allocation6], 256
    $region17: #{tpu_custom_call.1} parent=1 // pred_fallthru
      _
    %131 = vsyncpa [#allocation5], 1
    %132 = vsyncpa [#allocation6], 1

</llo_original>
